<compile_context>
chip_gen: v7x
topology: tpu7x:2x2x1
jax: 0.10.0
libtpu: 0.0.40
codegen_flags: <defaults>
</compile_context>

<pallas_src>
import jax
import jax.numpy as jnp
from jax import lax
from jax.experimental import pallas as pl
from jax.experimental.pallas import tpu as pltpu


def mlp_softmax_kernel(x_ref, w1_ref, b1_ref, w2_ref, b2_ref, w3_ref, b3_ref, o_ref):
    x = x_ref[...]  # [tb, num_inputs]  (batch rows, features on lanes)

    # h1^T = W1 . x^T : contract the feature dim (lane dim of both operands) -> [5, tb].
    # Batch lands on the lane axis for everything downstream.
    h1 = lax.dot_general(
        w1_ref[...], x,
        dimension_numbers=(((1,), (1,)), ((), ())),
        preferred_element_type=jnp.float32,
    ) + b1_ref[...]
    h1 = jnp.maximum(h1, 0.0)

    # h2^T = W2 . h1^T -> [20, tb]
    h2 = jnp.dot(w2_ref[...], h1, preferred_element_type=jnp.float32) + b2_ref[...]
    h2 = jnp.maximum(h2, 0.0)

    # logits^T = W3 . h2^T -> [num_classes, tb]
    logits = jnp.dot(w3_ref[...], h2, preferred_element_type=jnp.float32) + b3_ref[...]

    # Dropout(p=0.3): identity in eval-mode forward.
    # TODO(synk): train-mode dropout (pltpu.prng_seed + prng_random_bits mask, 1/(1-p) scale) not emulated.

    # Softmax over the class axis == sublane axis 0; batch stays lane-dense.
    m = jnp.max(logits, axis=0, keepdims=True)
    e = jnp.exp(logits - m)
    denom = jnp.sum(e, axis=0, keepdims=True)
    o_ref[...] = (e * pl.reciprocal(denom, approx=False)).astype(o_ref.dtype)


def _round_up(n, m):
    return ((n + m - 1) // m) * m


def custom_module_forward(x, w1, b1, w2, b2, w3, b3, *, block_batch=8192):
    """Batched MLP forward.

    x: [batch, num_inputs] float32
    w1,w2,w3: PyTorch-layout [out, in]; b1,b2,b3: [out]
    Returns [batch, num_classes] softmax probabilities.
    """
    batch, num_inputs = x.shape
    num_classes = w3.shape[0]

    # Biases as [out, 1] so they broadcast over the lane (batch) axis in the kernel.
    b1c = b1.reshape(-1, 1)
    b2c = b2.reshape(-1, 1)
    b3c = b3.reshape(-1, 1)

    # Batch tile: lane-dense multiple of 128, big enough to amortize per-step overhead,
    # but ~ceil(batch/2) for moderate batches so >=2 "parallel" grid steps exist (v7x megacore).
    tb_target = min(block_batch, max(128, _round_up(pl.cdiv(batch, 2), 128)))
    if batch <= tb_target:
        tb = batch                      # single full block (block == full array dims)
    else:
        tb = tb_target                  # multiple of 128; last block may be partial (masked)
    grid = (pl.cdiv(batch, tb),)

    # Params: constant block index across the batch grid axis -> fetched once, VMEM-resident.
    def param_spec(a):
        return pl.BlockSpec(a.shape, lambda i: (0, 0))

    out_t = pl.pallas_call(
        mlp_softmax_kernel,
        out_shape=jax.ShapeDtypeStruct((num_classes, batch), jnp.float32),
        grid_spec=pltpu.PrefetchScalarGridSpec(
            num_scalar_prefetch=0,
            grid=grid,
            in_specs=[
                pl.BlockSpec((tb, num_inputs), lambda i: (i, 0)),
                param_spec(w1), param_spec(b1c),
                param_spec(w2), param_spec(b2c),
                param_spec(w3), param_spec(b3c),
            ],
            # Output is [num_classes, batch]: batch (tb) on the lane axis -> unmasked,
            # lane-dense stores. Wrapper transposes back to [batch, num_classes].
            out_specs=pl.BlockSpec((num_classes, tb), lambda i: (0, i)),
        ),
        compiler_params=pltpu.CompilerParams(
            # Batch tiles are independent -> megacore sharding on v7x (2 TCs/chip).
            dimension_semantics=("parallel",),
            # Headroom for tb up to 8192 (~13 MiB used); v5e default scoped is only 16 MiB.
            vmem_limit_bytes=32 * 1024 * 1024,
        ),
    )(x, w1, b1c, w2, b2c, w3, b3c)

    return out_t.T  # [batch, num_classes]


def init_linear(key, fan_in, fan_out):
    """Deterministic PyTorch-style uniform(-1/sqrt(fan_in), 1/sqrt(fan_in)) init.

    Weight returned in PyTorch layout [fan_out, fan_in]; bias [fan_out]."""
    kw, kb = jax.random.split(key)
    bound = 1.0 / (fan_in ** 0.5)
    w = jax.random.uniform(kw, (fan_out, fan_in), jnp.float32, -bound, bound)
    b = jax.random.uniform(kb, (fan_out,), jnp.float32, -bound, bound)
    return w, b


def _reference(x, w1, b1, w2, b2, w3, b3):
    h1 = jnp.maximum(x @ w1.T + b1, 0.0)
    h2 = jnp.maximum(h1 @ w2.T + b2, 0.0)
    logits = h2 @ w3.T + b3
    return jax.nn.softmax(logits, axis=-1)


if __name__ == "__main__":
    num_inputs = 32
    num_classes = 10

    key = jax.random.PRNGKey(0)
    kx, k1, k2, k3, kx2, kx3 = jax.random.split(key, 6)

    w1, b1 = init_linear(k1, num_inputs, 5)
    w2, b2 = init_linear(k2, 5, 20)
    w3, b3 = init_linear(k3, 20, num_classes)

    # Case 1: small batch -> single full block (block shape == array dims).
    batch = 8
    x = jax.random.normal(kx, (batch, num_inputs), jnp.float32)
    out = jax.block_until_ready(custom_module_forward(x, w1, b1, w2, b2, w3, b3))
    ref = _reference(x, w1, b1, w2, b2, w3, b3)
    assert out.shape == (batch, num_classes)
    assert jnp.allclose(out, ref, atol=1e-5, rtol=1e-5), "mismatch vs reference (batch=8)"

    # Case 2: batch not a multiple of 8 -> still a single full block, no padding.
    batch2 = 20
    x2 = jax.random.normal(kx2, (batch2, num_inputs), jnp.float32)
    out2 = jax.block_until_ready(custom_module_forward(x2, w1, b1, w2, b2, w3, b3))
    ref2 = _reference(x2, w1, b1, w2, b2, w3, b3)
    assert out2.shape == (batch2, num_classes)
    assert jnp.allclose(out2, ref2, atol=1e-5, rtol=1e-5), "mismatch vs reference (batch=20)"

    # Case 3: multi-step grid with a partial last block (no jnp.pad): 300 rows, tb=128 -> grid=3.
    batch3 = 300
    x3 = jax.random.normal(kx3, (batch3, num_inputs), jnp.float32)
    out3 = jax.block_until_ready(
        custom_module_forward(x3, w1, b1, w2, b2, w3, b3, block_batch=128))
    ref3 = _reference(x3, w1, b1, w2, b2, w3, b3)
    assert out3.shape == (batch3, num_classes)
    assert jnp.allclose(out3, ref3, atol=1e-5, rtol=1e-5), "mismatch vs reference (batch=300)"

    print("KERNEL_OK")
</pallas_src>

<mosaic_0001>
module attributes {stable_mosaic.version = 11 : i64} {
  func.func @mlp_softmax_kernel(%arg0: i32, %arg1: memref<8x32xf32, #tpu.memory_space<vmem>>, %arg2: memref<5x32xf32, #tpu.memory_space<vmem>>, %arg3: memref<5x1xf32, #tpu.memory_space<vmem>>, %arg4: memref<20x5xf32, #tpu.memory_space<vmem>>, %arg5: memref<20x1xf32, #tpu.memory_space<vmem>>, %arg6: memref<10x20xf32, #tpu.memory_space<vmem>>, %arg7: memref<10x1xf32, #tpu.memory_space<vmem>>, %arg8: memref<10x8xf32, #tpu.memory_space<vmem>>) attributes {dimension_semantics = [#tpu.dimension_semantics<parallel>], iteration_bounds = array<i64: 1>, scalar_prefetch = 0 : i64, scratch_operands = 0 : i64, tpu.core_type = #tpu.core_type<tc>, window_params = [{transform_indices = @transform_0, window_bounds = array<i64: 8, 32>}, {pipeline_mode = #tpu.pipeline_mode<synchronous>, transform_indices = @transform_1, window_bounds = array<i64: 5, 32>}, {pipeline_mode = #tpu.pipeline_mode<synchronous>, transform_indices = @transform_2, window_bounds = array<i64: 5, 1>}, {pipeline_mode = #tpu.pipeline_mode<synchronous>, transform_indices = @transform_3, window_bounds = array<i64: 20, 5>}, {pipeline_mode = #tpu.pipeline_mode<synchronous>, transform_indices = @transform_4, window_bounds = array<i64: 20, 1>}, {pipeline_mode = #tpu.pipeline_mode<synchronous>, transform_indices = @transform_5, window_bounds = array<i64: 10, 20>}, {pipeline_mode = #tpu.pipeline_mode<synchronous>, transform_indices = @transform_6, window_bounds = array<i64: 10, 1>}, {transform_indices = @transform_7, window_bounds = array<i64: 10, 8>}]} {
    %c0 = arith.constant 0 : index
    %c0_0 = arith.constant 0 : index
    %0 = vector.load %arg1[%c0, %c0_0] : memref<8x32xf32, #tpu.memory_space<vmem>>, vector<8x32xf32>
    %c0_1 = arith.constant 0 : index
    %c0_2 = arith.constant 0 : index
    %1 = vector.load %arg2[%c0_1, %c0_2] : memref<5x32xf32, #tpu.memory_space<vmem>>, vector<5x32xf32>
    %cst = arith.constant dense<0.000000e+00> : vector<5x8xf32>
    %2 = tpu.matmul %1, %0, %cst {dimension_numbers = #tpu.dot_dimension_numbers<[1], [1], [0], [0], [0, 0, 1, 0], [], []>} : vector<5x32xf32>, vector<8x32xf32>, vector<5x8xf32> -> vector<5x8xf32>
    %c0_3 = arith.constant 0 : index
    %c0_4 = arith.constant 0 : index
    %3 = vector.load %arg3[%c0_3, %c0_4] : memref<5x1xf32, #tpu.memory_space<vmem>>, vector<5x1xf32>
    %4 = vector.broadcast %3 : vector<5x1xf32> to vector<5x8xf32>
    %5 = arith.addf %2, %4 : vector<5x8xf32>
    %cst_5 = arith.constant 0.000000e+00 : f32
    %6 = vector.broadcast %cst_5 : f32 to vector<5x8xf32>
    %7 = arith.maximumf %5, %6 : vector<5x8xf32>
    %c0_6 = arith.constant 0 : index
    %c0_7 = arith.constant 0 : index
    %8 = vector.load %arg4[%c0_6, %c0_7] : memref<20x5xf32, #tpu.memory_space<vmem>>, vector<20x5xf32>
    %cst_8 = arith.constant dense<0.000000e+00> : vector<20x8xf32>
    %9 = tpu.matmul %8, %7, %cst_8 {dimension_numbers = #tpu.dot_dimension_numbers<[1], [0], [0], [1], [0, 0, 1, 1], [], []>} : vector<20x5xf32>, vector<5x8xf32>, vector<20x8xf32> -> vector<20x8xf32>
    %c0_9 = arith.constant 0 : index
    %c0_10 = arith.constant 0 : index
    %10 = vector.load %arg5[%c0_9, %c0_10] : memref<20x1xf32, #tpu.memory_space<vmem>>, vector<20x1xf32>
    %11 = vector.broadcast %10 : vector<20x1xf32> to vector<20x8xf32>
    %12 = arith.addf %9, %11 : vector<20x8xf32>
    %cst_11 = arith.constant 0.000000e+00 : f32
    %13 = vector.broadcast %cst_11 : f32 to vector<20x8xf32>
    %14 = arith.maximumf %12, %13 : vector<20x8xf32>
    %c0_12 = arith.constant 0 : index
    %c0_13 = arith.constant 0 : index
    %15 = vector.load %arg6[%c0_12, %c0_13] : memref<10x20xf32, #tpu.memory_space<vmem>>, vector<10x20xf32>
    %cst_14 = arith.constant dense<0.000000e+00> : vector<10x8xf32>
    %16 = tpu.matmul %15, %14, %cst_14 {dimension_numbers = #tpu.dot_dimension_numbers<[1], [0], [0], [1], [0, 0, 1, 1], [], []>} : vector<10x20xf32>, vector<20x8xf32>, vector<10x8xf32> -> vector<10x8xf32>
    %c0_15 = arith.constant 0 : index
    %c0_16 = arith.constant 0 : index
    %17 = vector.load %arg7[%c0_15, %c0_16] : memref<10x1xf32, #tpu.memory_space<vmem>>, vector<10x1xf32>
    %18 = vector.broadcast %17 : vector<10x1xf32> to vector<10x8xf32>
    %19 = arith.addf %16, %18 : vector<10x8xf32>
    %cst_17 = arith.constant dense<0xFF800000> : vector<8xf32>
    %20 = vector.multi_reduction <maximumf>, %19, %cst_17 [0] : vector<10x8xf32> to vector<8xf32>
    %21 = vector.shape_cast %20 : vector<8xf32> to vector<1x8xf32>
    %22 = vector.broadcast %21 : vector<1x8xf32> to vector<10x8xf32>
    %23 = arith.subf %19, %22 : vector<10x8xf32>
    %24 = math.exp %23 : vector<10x8xf32>
    %cst_18 = arith.constant dense<0.000000e+00> : vector<8xf32>
    %25 = vector.multi_reduction <add>, %24, %cst_18 [0] : vector<10x8xf32> to vector<8xf32>
    %26 = vector.shape_cast %25 : vector<8xf32> to vector<1x8xf32>
    %27 = tpu.reciprocal %26 : vector<1x8xf32> -> vector<1x8xf32>
    %28 = vector.broadcast %27 : vector<1x8xf32> to vector<10x8xf32>
    %29 = arith.mulf %24, %28 : vector<10x8xf32>
    %c0_19 = arith.constant 0 : index
    %c0_20 = arith.constant 0 : index
    %30 = vector.load %arg8[%c0_19, %c0_20] : memref<10x8xf32, #tpu.memory_space<vmem>>, vector<10x8xf32>
    tpu.vector_store %arg8[%c0_19, %c0_20], %29 {strides = array<i32>} : memref<10x8xf32, #tpu.memory_space<vmem>>, vector<10x8xf32>,
    return
  }
  func.func @transform_0(%arg0: i32) -> (i32, i32) {
    %c0_i32 = arith.constant 0 : i32
    %c0_i32_0 = arith.constant 0 : i32
    return %arg0, %c0_i32 : i32, i32
  }
  func.func @transform_1(%arg0: i32) -> (i32, i32) {
    %c0_i32 = arith.constant 0 : i32
    %c0_i32_0 = arith.constant 0 : i32
    %c0_i32_1 = arith.constant 0 : i32
    return %c0_i32, %c0_i32_0 : i32, i32
  }
  func.func @transform_2(%arg0: i32) -> (i32, i32) {
    %c0_i32 = arith.constant 0 : i32
    %c0_i32_0 = arith.constant 0 : i32
    %c0_i32_1 = arith.constant 0 : i32
    return %c0_i32, %c0_i32_0 : i32, i32
  }
  func.func @transform_3(%arg0: i32) -> (i32, i32) {
    %c0_i32 = arith.constant 0 : i32
    %c0_i32_0 = arith.constant 0 : i32
    %c0_i32_1 = arith.constant 0 : i32
    return %c0_i32, %c0_i32_0 : i32, i32
  }
  func.func @transform_4(%arg0: i32) -> (i32, i32) {
    %c0_i32 = arith.constant 0 : i32
    %c0_i32_0 = arith.constant 0 : i32
    %c0_i32_1 = arith.constant 0 : i32
    return %c0_i32, %c0_i32_0 : i32, i32
  }
  func.func @transform_5(%arg0: i32) -> (i32, i32) {
    %c0_i32 = arith.constant 0 : i32
    %c0_i32_0 = arith.constant 0 : i32
    %c0_i32_1 = arith.constant 0 : i32
    return %c0_i32, %c0_i32_0 : i32, i32
  }
  func.func @transform_6(%arg0: i32) -> (i32, i32) {
    %c0_i32 = arith.constant 0 : i32
    %c0_i32_0 = arith.constant 0 : i32
    %c0_i32_1 = arith.constant 0 : i32
    return %c0_i32, %c0_i32_0 : i32, i32
  }
  func.func @transform_7(%arg0: i32) -> (i32, i32) {
    %c0_i32 = arith.constant 0 : i32
    %c0_i32_0 = arith.constant 0 : i32
    return %c0_i32, %arg0 : i32, i32
  }
}

</mosaic_0001>

<llo_original>
// kernel: tpu_custom_call.1
$region0: #{tpu_custom_call.1}
  #allocation0 [shape = 'u32[]', space=smem, size = 0x4, offset = 0x4, fixed_abs, tag = 'smem constant byte address 0x4 - core index']
  #allocation1 [shape = 'u32[144,128]{1,0:T(1,128)}', space=vmem, size = 0x12000, scoped, tag = 'internal scratch']
  %s0 = inlined_call_operand.vmem [shape: f32[8,32], index: 0, kind: input, shape index: {}]
  %s1 = inlined_call_operand.vmem [shape: f32[5,32], index: 1, kind: input, shape index: {}]
  %s2 = inlined_call_operand.vmem [shape: f32[5,1], index: 2, kind: input, shape index: {}]
  %s3 = inlined_call_operand.vmem [shape: f32[20,5], index: 3, kind: input, shape index: {}]
  %s4 = inlined_call_operand.vmem [shape: f32[20,1], index: 4, kind: input, shape index: {}]
  %s5 = inlined_call_operand.vmem [shape: f32[10,20], index: 5, kind: input, shape index: {}]
  %s6 = inlined_call_operand.vmem [shape: f32[10,1], index: 6, kind: input, shape index: {}]
  %s7 = inlined_call_operand.vmem [shape: f32[10,8], index: 7, kind: output, shape index: {}]
  %s8 = sld [smem:[#allocation0]]
  $region38: #{tpu_custom_call.1} parent=0
    _
  %s10 = ssub.s32 1, %s8
  %s11 = scalar_select 0, %s10, %s8
  // Predicated region
  $region2: #{tpu_custom_call.1} parent=0 // pred_check
    _
  $region3: #{tpu_custom_call.1} parent=0 // pred_check_branch
    %13 = sbr.rel (0) target = $region5
  $region4: #{tpu_custom_call.1} parent=0 // pred_region
    _
  $region5: #{tpu_custom_call.1} parent=0 // pred_fallthru
    _
  // Predicated region
  $region6: #{tpu_custom_call.1} parent=0 // pred_check
    _
  $region7: #{tpu_custom_call.1} parent=0 // pred_check_branch
    %15 = sbr.rel (0) target = $region9
  $region8: #{tpu_custom_call.1} parent=0 // pred_region
    _
  $region9: #{tpu_custom_call.1} parent=0 // pred_fallthru
    _
  // Predicated region
  $region10: #{tpu_custom_call.1} parent=0 // pred_check
    _
  $region11: #{tpu_custom_call.1} parent=0 // pred_check_branch
    %17 = sbr.rel (0) target = $region13
  $region12: #{tpu_custom_call.1} parent=0 // pred_region
    _
  $region13: #{tpu_custom_call.1} parent=0 // pred_fallthru
    _
  // Predicated region
  $region14: #{tpu_custom_call.1} parent=0 // pred_check
    _
  $region15: #{tpu_custom_call.1} parent=0 // pred_check_branch
    %19 = sbr.rel (0) target = $region17
  $region16: #{tpu_custom_call.1} parent=0 // pred_region
    _
  $region17: #{tpu_custom_call.1} parent=0 // pred_fallthru
    _
  // Predicated region
  $region18: #{tpu_custom_call.1} parent=0 // pred_check
    _
  $region19: #{tpu_custom_call.1} parent=0 // pred_check_branch
    %21 = sbr.rel (0) target = $region21
  $region20: #{tpu_custom_call.1} parent=0 // pred_region
    _
  $region21: #{tpu_custom_call.1} parent=0 // pred_fallthru
    _
  // Predicated region
  $region22: #{tpu_custom_call.1} parent=0 // pred_check
    _
  $region23: #{tpu_custom_call.1} parent=0 // pred_check_branch
    %23 = sbr.rel (0) target = $region25
  $region24: #{tpu_custom_call.1} parent=0 // pred_region
    _
  $region25: #{tpu_custom_call.1} parent=0 // pred_fallthru
    _
  // Predicated region
  $region26: #{tpu_custom_call.1} parent=0 // pred_check
    _
  $region27: #{tpu_custom_call.1} parent=0 // pred_check_branch
    %25 = sbr.rel (0) target = $region29
  $region28: #{tpu_custom_call.1} parent=0 // pred_region
    _
  $region29: #{tpu_custom_call.1} parent=0 // pred_fallthru
    _
  %v26 = vld [vmem:[%s0] sm:$0xff]
  %v27 = vld [vmem:[%s1] sm:$0x1f]
  %v28 = vld [vmem:[%s2] sm:$0x1f]
  %30 = vset.pattern.permute.xlu0 0
  %31 = vperm.xlu0 %30, %v28
  %v32 = vpop.permute.xlu0 %31
  %vm34 = vcmask 261120
  %v36 = vsel %vm34, %v27, 0
  %v39 = vsel %vm34, %v26, 0
  %41 = vmatprep.subr.mxu0 0.0
  %42 = vmatpush1.xpose.msra.mxu0 %v39
  %43 = vmatprep.subr.mxu0 0.0
  %44 = vmatpush1.xpose.msra.mxu0 0.0
  %45 = vmatprep.subr.mxu0 0.0
  %46 = vmatpush1.xpose.msra.mxu0 0.0
  %47 = vmatprep.subr.mxu0 0.0
  %48 = vmatpush1.xpose.msra.mxu0 0.0
  %49 = vmatprep.subr.mxu0 0.0
  %50 = vmatpush1.xpose.msra.mxu0 0.0
  %51 = vmatprep.subr.mxu0 0.0
  %52 = vmatpush1.xpose.msra.mxu0 0.0
  %53 = vmatprep.subr.mxu0 0.0
  %54 = vmatpush1.xpose.msra.mxu0 0.0
  %55 = vmatprep.subr.mxu0 0.0
  %56 = vmatpush1.xpose.msra.mxu0 0.0
  %57 = vmatprep.subr.mxu0 0.0
  %58 = vmatpush1.xpose.msra.mxu0 0.0
  %59 = vmatprep.subr.mxu0 0.0
  %60 = vmatpush1.xpose.msra.mxu0 0.0
  %61 = vmatprep.subr.mxu0 0.0
  %62 = vmatpush1.xpose.msra.mxu0 0.0
  %63 = vmatprep.subr.mxu0 0.0
  %64 = vmatpush1.xpose.msra.mxu0 0.0
  %65 = vmatprep.subr.mxu0 0.0
  %66 = vmatpush1.xpose.msra.mxu0 0.0
  %67 = vmatprep.subr.mxu0 0.0
  %68 = vmatpush1.xpose.msra.mxu0 0.0
  %69 = vmatprep.subr.mxu0 0.0
  %70 = vmatpush1.xpose.msra.mxu0 0.0
  %71 = vmatprep.subr.mxu0 0.0
  %72 = vmatpush1.xpose.msra.mxu0 0.0
  %73 = vmatprep.subr.mxu0 0.0
  %74 = vmatpush1.xpose.msra.mxu0 0.0
  %75 = vmatprep.subr.mxu0 0.0
  %76 = vmatpush1.xpose.msra.mxu0 0.0
  %77 = vmatprep.subr.mxu0 0.0
  %78 = vmatpush1.xpose.msra.mxu0 0.0
  %79 = vmatprep.subr.mxu0 0.0
  %80 = vmatpush1.xpose.msra.mxu0 0.0
  %81 = vmatprep.subr.mxu0 0.0
  %82 = vmatpush1.xpose.msra.mxu0 0.0
  %83 = vmatprep.subr.mxu0 0.0
  %84 = vmatpush1.xpose.msra.mxu0 0.0
  %85 = vmatprep.subr.mxu0 0.0
  %86 = vmatpush1.xpose.msra.mxu0 0.0
  %87 = vmatprep.subr.mxu0 0.0
  %88 = vmatpush1.xpose.msra.mxu0 0.0
  %89 = vmatprep.subr.mxu0 0.0
  %90 = vmatpush1.xpose.msra.mxu0 0.0
  %91 = vmatprep.subr.mxu0 0.0
  %92 = vmatpush1.xpose.msra.mxu0 0.0
  %93 = vmatprep.subr.mxu0 0.0
  %94 = vmatpush1.xpose.msra.mxu0 0.0
  %95 = vmatprep.subr.mxu0 0.0
  %96 = vmatpush1.xpose.msra.mxu0 0.0
  %97 = vmatprep.subr.mxu0 0.0
  %98 = vmatpush1.xpose.msra.mxu0 0.0
  %99 = vmatprep.subr.mxu0 0.0
  %100 = vmatpush1.xpose.msra.mxu0 0.0
  %101 = vmatprep.subr.mxu0 0.0
  %102 = vmatpush1.xpose.msra.mxu0 0.0
  %103 = vmatprep.subr.mxu0 0.0
  %104 = vmatpush1.xpose.msra.mxu0 0.0
  %105 = vmatprep.mubr.f32.mxu0 0.0
  %106 = vmatmul.mubr.f32.gmra.mrb[0].mxu0 %v36
  %v107 = vpop.f32.mrb[0].mxu0
  %v108 = vadd.f32 %v32, %v107
  %v109 = vpop.f32.mrb[0].mxu0
  %110 = vdwg.mxu0
  %v111 = vmax.f32 %v108, 0.0
  %v112 = vld [vmem:[%s3] sm:$0xff]
  %v113 = vld [vmem:[%s3 + $0x8] sm:$0xff]
  %v114 = vld [vmem:[%s3 + $0x10] sm:$0xf]
  %v115 = vld [vmem:[%s4] sm:$0xff]
  %v116 = vld [vmem:[%s4 + $0x8] sm:$0xff]
  %v117 = vld [vmem:[%s4 + $0x10] sm:$0xf]
  %119 = vset.pattern.permute.xlu0 0
  %120 = vperm.xlu0 %119, %v115
  %v121 = vpop.permute.xlu0 %120
  %124 = vset.pattern.permute.xlu0 0
  %125 = vperm.xlu0 %124, %v116
  %v126 = vpop.permute.xlu0 %125
  %129 = vset.pattern.permute.xlu0 0
  %130 = vperm.xlu0 %129, %v117
  %v131 = vpop.permute.xlu0 %130
  %vm133 = vcmask 39936
  %v135 = vsel %vm133, %v112, 0
  %v138 = vsel %vm133, %v113, 0
  %v141 = vsel %vm133, %v114, 0
  %vm143 = vcmask 1044480
  %v145 = vsel %vm143, %v111, 0
  %147 = vmatprep.subr.mxu0 0.0
  %148 = vmatpush1.msra.mxu0 %v145
  %149 = vmatprep.subr.mxu0 0.0
  %150 = vmatpush1.msra.mxu0 0.0
  %151 = vmatprep.subr.mxu0 0.0
  %152 = vmatpush1.msra.mxu0 0.0
  %153 = vmatprep.subr.mxu0 0.0
  %154 = vmatpush1.msra.mxu0 0.0
  %155 = vmatprep.subr.mxu0 0.0
  %156 = vmatpush1.msra.mxu0 0.0
  %157 = vmatprep.subr.mxu0 0.0
  %158 = vmatpush1.msra.mxu0 0.0
  %159 = vmatprep.subr.mxu0 0.0
  %160 = vmatpush1.msra.mxu0 0.0
  %161 = vmatprep.subr.mxu0 0.0
  %162 = vmatpush1.msra.mxu0 0.0
  %163 = vmatprep.subr.mxu0 0.0
  %164 = vmatpush1.msra.mxu0 0.0
  %165 = vmatprep.subr.mxu0 0.0
  %166 = vmatpush1.msra.mxu0 0.0
  %167 = vmatprep.subr.mxu0 0.0
  %168 = vmatpush1.msra.mxu0 0.0
  %169 = vmatprep.subr.mxu0 0.0
  %170 = vmatpush1.msra.mxu0 0.0
  %171 = vmatprep.subr.mxu0 0.0
  %172 = vmatpush1.msra.mxu0 0.0
  %173 = vmatprep.subr.mxu0 0.0
  %174 = vmatpush1.msra.mxu0 0.0
  %175 = vmatprep.subr.mxu0 0.0
  %176 = vmatpush1.msra.mxu0 0.0
  %177 = vmatprep.subr.mxu0 0.0
  %178 = vmatpush1.msra.mxu0 0.0
  %179 = vmatprep.subr.mxu0 0.0
  %180 = vmatpush1.msra.mxu0 0.0
  %181 = vmatprep.subr.mxu0 0.0
  %182 = vmatpush1.msra.mxu0 0.0
  %183 = vmatprep.subr.mxu0 0.0
  %184 = vmatpush1.msra.mxu0 0.0
  %185 = vmatprep.subr.mxu0 0.0
  %186 = vmatpush1.msra.mxu0 0.0
  %187 = vmatprep.subr.mxu0 0.0
  %188 = vmatpush1.msra.mxu0 0.0
  %189 = vmatprep.subr.mxu0 0.0
  %190 = vmatpush1.msra.mxu0 0.0
  %191 = vmatprep.subr.mxu0 0.0
  %192 = vmatpush1.msra.mxu0 0.0
  %193 = vmatprep.subr.mxu0 0.0
  %194 = vmatpush1.msra.mxu0 0.0
  %195 = vmatprep.subr.mxu0 0.0
  %196 = vmatpush1.msra.mxu0 0.0
  %197 = vmatprep.subr.mxu0 0.0
  %198 = vmatpush1.msra.mxu0 0.0
  %199 = vmatprep.subr.mxu0 0.0
  %200 = vmatpush1.msra.mxu0 0.0
  %201 = vmatprep.subr.mxu0 0.0
  %202 = vmatpush1.msra.mxu0 0.0
  %203 = vmatprep.subr.mxu0 0.0
  %204 = vmatpush1.msra.mxu0 0.0
  %205 = vmatprep.subr.mxu0 0.0
  %206 = vmatpush1.msra.mxu0 0.0
  %207 = vmatprep.subr.mxu0 0.0
  %208 = vmatpush1.msra.mxu0 0.0
  %209 = vmatprep.subr.mxu0 0.0
  %210 = vmatpush1.msra.mxu0 0.0
  %211 = vmatprep.mubr.f32.mxu0 0.0
  %212 = vmatmul.mubr.f32.gmra.mrb[0].mxu0 %v135
  %v213 = vpop.f32.mrb[0].mxu0
  %v214 = vadd.f32 %v121, %v213
  %v215 = vpop.f32.mrb[0].mxu0
  %216 = vmatprep.mubr.f32.mxu0 0.0
  %217 = vmatmul.mubr.f32.gmra.mrb[0].mxu0 %v138
  %v218 = vpop.f32.mrb[0].mxu0
  %v219 = vadd.f32 %v126, %v218
  %v220 = vpop.f32.mrb[0].mxu0
  %221 = vmatprep.mubr.f32.mxu0 0.0
  %222 = vmatmul.mubr.f32.gmra.mrb[0].mxu0 %v141
  %v223 = vpop.f32.mrb[0].mxu0
  %v224 = vadd.f32 %v131, %v223
  %v225 = vpop.f32.mrb[0].mxu0
  %226 = vdwg.mxu0
  %v227 = vmax.f32 %v214, 0.0
  %v228 = vmax.f32 %v219, 0.0
  %v229 = vmax.f32 %v224, 0.0
  %v230 = vld [vmem:[%s5] sm:$0xff]
  %v231 = vld [vmem:[%s5 + $0x8] sm:$0x3]
  %v232 = vld [vmem:[%s6] sm:$0xff]
  %v233 = vld [vmem:[%s6 + $0x8] sm:$0x3]
  %235 = vset.pattern.permute.xlu0 0
  %236 = vperm.xlu0 %235, %v232
  %v237 = vpop.permute.xlu0 %236
  %240 = vset.pattern.permute.xlu0 0
  %241 = vperm.xlu0 %240, %v233
  %v242 = vpop.permute.xlu0 %241
  %vm244 = vcmask 162816
  %v246 = vsel %vm244, %v230, 0
  %v249 = vsel %vm244, %v231, 0
  %vm251 = vcmask 1043456
  %v253 = vsel %vm251, %v229, 0
  %255 = vmatprep.subr.mxu0 0.0
  %256 = vmatpush1.msra.mxu0 %v227
  %257 = vmatprep.subr.mxu0 0.0
  %258 = vmatpush1.msra.mxu0 %v228
  %259 = vmatprep.subr.mxu0 0.0
  %260 = vmatpush1.msra.mxu0 %v253
  %261 = vmatprep.subr.mxu0 0.0
  %262 = vmatpush1.msra.mxu0 0.0
  %263 = vmatprep.subr.mxu0 0.0
  %264 = vmatpush1.msra.mxu0 0.0
  %265 = vmatprep.subr.mxu0 0.0
  %266 = vmatpush1.msra.mxu0 0.0
  %267 = vmatprep.subr.mxu0 0.0
  %268 = vmatpush1.msra.mxu0 0.0
  %269 = vmatprep.subr.mxu0 0.0
  %270 = vmatpush1.msra.mxu0 0.0
  %271 = vmatprep.subr.mxu0 0.0
  %272 = vmatpush1.msra.mxu0 0.0
  %273 = vmatprep.subr.mxu0 0.0
  %274 = vmatpush1.msra.mxu0 0.0
  %275 = vmatprep.subr.mxu0 0.0
  %276 = vmatpush1.msra.mxu0 0.0
  %277 = vmatprep.subr.mxu0 0.0
  %278 = vmatpush1.msra.mxu0 0.0
  %279 = vmatprep.subr.mxu0 0.0
  %280 = vmatpush1.msra.mxu0 0.0
  %281 = vmatprep.subr.mxu0 0.0
  %282 = vmatpush1.msra.mxu0 0.0
  %283 = vmatprep.subr.mxu0 0.0
  %284 = vmatpush1.msra.mxu0 0.0
  %285 = vmatprep.subr.mxu0 0.0
  %286 = vmatpush1.msra.mxu0 0.0
  %287 = vmatprep.subr.mxu0 0.0
  %288 = vmatpush1.msra.mxu0 0.0
  %289 = vmatprep.subr.mxu0 0.0
  %290 = vmatpush1.msra.mxu0 0.0
  %291 = vmatprep.subr.mxu0 0.0
  %292 = vmatpush1.msra.mxu0 0.0
  %293 = vmatprep.subr.mxu0 0.0
  %294 = vmatpush1.msra.mxu0 0.0
  %295 = vmatprep.subr.mxu0 0.0
  %296 = vmatpush1.msra.mxu0 0.0
  %297 = vmatprep.subr.mxu0 0.0
  %298 = vmatpush1.msra.mxu0 0.0
  %299 = vmatprep.subr.mxu0 0.0
  %300 = vmatpush1.msra.mxu0 0.0
  %301 = vmatprep.subr.mxu0 0.0
  %302 = vmatpush1.msra.mxu0 0.0
  %303 = vmatprep.subr.mxu0 0.0
  %304 = vmatpush1.msra.mxu0 0.0
  %305 = vmatprep.subr.mxu0 0.0
  %306 = vmatpush1.msra.mxu0 0.0
  %307 = vmatprep.subr.mxu0 0.0
  %308 = vmatpush1.msra.mxu0 0.0
  %309 = vmatprep.subr.mxu0 0.0
  %310 = vmatpush1.msra.mxu0 0.0
  %311 = vmatprep.subr.mxu0 0.0
  %312 = vmatpush1.msra.mxu0 0.0
  %313 = vmatprep.subr.mxu0 0.0
  %314 = vmatpush1.msra.mxu0 0.0
  %315 = vmatprep.subr.mxu0 0.0
  %316 = vmatpush1.msra.mxu0 0.0
  %317 = vmatprep.subr.mxu0 0.0
  %318 = vmatpush1.msra.mxu0 0.0
  %319 = vmatprep.mubr.f32.mxu0 0.0
  %320 = vmatmul.mubr.f32.gmra.mrb[0].mxu0 %v246
  %v321 = vpop.f32.mrb[0].mxu0
  %v322 = vadd.f32 %v237, %v321
  %v323 = vpop.f32.mrb[0].mxu0
  %324 = vmatprep.mubr.f32.mxu0 0.0
  %325 = vmatmul.mubr.f32.gmra.mrb[0].mxu0 %v249
  %v326 = vpop.f32.mrb[0].mxu0
  %v327 = vadd.f32 %v242, %v326
  %v328 = vpop.f32.mrb[0].mxu0
  %329 = vdwg.mxu0
  %vm330 = vcmask 64512
  %v331 = vsel %vm330, %v322, -inf
  %vm332 = vcmask 58368
  %v333 = vsel %vm332, %v327, -inf
  %v334 = vmax.f32 %v331, %v333
  %v335 = vrot.slane %v334, 4
  %v336 = vmax.f32 %v334, %v335
  %v337 = vrot.slane %v336, 2
  %v338 = vmax.f32 %v336, %v337
  %v339 = vrot.slane %v338, 1
  %v340 = vmax.f32 %v338, %v339
  %v341 = vsub.f32 %v322, %v340
  %v342 = vsub.f32 %v327, %v340
  %v343 = vmul.f32 %v341, 1.442695
  %v344 = vpow.pop %v343
  %v345 = vmul.f32 %v342, 1.442695
  %v346 = vpow.pop %v345
  %v347 = vsel %vm330, %v344, 0.0
  %v348 = vsel %vm332, %v346, 0.0
  %v349 = vadd.f32 %v347, %v348
  %v350 = vrot.slane %v349, 4
  %v351 = vadd.f32 %v349, %v350
  %v352 = vrot.slane %v351, 2
  %v353 = vadd.f32 %v351, %v352
  %v354 = vrot.slane %v353, 1
  %v355 = vadd.f32 %v353, %v354
  %v356 = vrcp.pop %v355
  %v357 = vmul.f32 %v344, %v356
  %v358 = vmul.f32 %v346, %v356
  %359 = vst.msk [vmem:[%s7] sm:$0xff] %vm330, %v357
  %360 = vst.msk [vmem:[%s7 + $0x8] sm:$0x3] %vm332, %v358
  // Predicated region
  $region30: #{tpu_custom_call.1} parent=0 // pred_check
    _
  $region31: #{tpu_custom_call.1} parent=0 // pred_check_branch
    %362 = sbr.rel (0) target = $region33
  $region32: #{tpu_custom_call.1} parent=0 // pred_region
    _
  $region33: #{tpu_custom_call.1} parent=0 // pred_fallthru
    _
  // Predicated region
  $region34: #{tpu_custom_call.1} parent=0 // pred_check
    _
  $region35: #{tpu_custom_call.1} parent=0 // pred_check_branch
    %364 = sbr.rel (0) target = $region37
  $region36: #{tpu_custom_call.1} parent=0 // pred_region
    _
  $region37: #{tpu_custom_call.1} parent=0 // pred_fallthru
    _

</llo_original>
